<compile_context>
chip_gen: v7x
topology: tpu7x:2x2x1
jax: 0.10.0
libtpu: 0.0.40
codegen_flags: <defaults>
</compile_context>

<pallas_src>
import jax
import jax.numpy as jnp
from jax.experimental import pallas as pl
from jax.experimental.pallas import tpu as pltpu


def _sdpa_dropout_kernel(scale_ref, p_ref, q_ref, k_ref, v_ref, u_ref, o_ref):
    """Batched: softmax(q @ k^T / scale) -> dropout -> @ v over all BH heads."""
    inv_scale = 1.0 / scale_ref[0]          # scalar; fold the full-tile divide away
    p = p_ref[0]

    q = q_ref[...] * inv_scale              # (BH, Sq, D)  Sq*D work vs Sq*Sk divide
    k = k_ref[...]                          # (BH, Sk, D)
    v = v_ref[...]                          # (BH, Sk, Dv)

    # scores: contract last dim of q against last dim of k (no explicit k.T)
    s = jnp.einsum('bqd,bkd->bqk', q, k, preferred_element_type=jnp.float32)

    # numerically stable softmax, kept un-normalized; stats are (BH, Sq, 1)
    m = jnp.max(s, axis=-1, keepdims=True)
    e = jnp.exp(s - m)
    denom = jnp.sum(e, axis=-1, keepdims=True)

    # Fuse softmax normalization with the dropout survivor rescale 1/(1-p).
    # Guard p == 1.0 (all dropped) so we never multiply by inf.
    inv_keep = jnp.where(p < 1.0, 1.0 / (1.0 - p), 0.0)
    row_scale = inv_keep / denom            # (BH, Sq, 1): only divide in the kernel

    keep = u_ref[...] >= p                  # single compare per score element
    dropped = jnp.where(keep, e * row_scale, 0.0)

    out = jnp.einsum('bqk,bkd->bqd', dropped.astype(v.dtype), v,
                     preferred_element_type=jnp.float32)
    o_ref[...] = out.astype(o_ref.dtype)


def sdpa_dropout(query, key, value, inv_scale_factor, dropout_p, seed=0):
    """query (B,H,Sq,D), key (B,H,Sk,D), value (B,H,Sk,Dv) -> (B,H,Sq,Dv)."""
    B, H, Sq, D = query.shape
    Sk = key.shape[2]
    Dv = value.shape[3]
    BH = B * H

    # Keep native dtype (no forced f32 upcast); matmuls accumulate in f32.
    q = query.reshape(BH, Sq, D)
    k = key.reshape(BH, Sk, D).astype(query.dtype)
    v = value.reshape(BH, Sk, Dv).astype(query.dtype)

    # Dropout noise precomputed with jax.random (portable across TPU + interpret).
    # TODO(synk): dropout mask cannot bitwise-match torch's RNG stream.
    u = jax.random.uniform(jax.random.PRNGKey(seed), (BH, Sq, Sk),
                           dtype=jnp.float32)

    scale_arr = jnp.asarray([inv_scale_factor], dtype=jnp.float32)
    p_arr = jnp.asarray([dropout_p], dtype=jnp.float32)

    smem = pl.BlockSpec(memory_space=pltpu.MemorySpace.SMEM)
    vmem = pl.BlockSpec(memory_space=pltpu.MemorySpace.VMEM)

    # Single invocation (grid=()): the whole problem is a few KiB, so one
    # contiguous slab in VMEM beats BH tiny grid steps (~0.35 us each).
    out = pl.pallas_call(
        _sdpa_dropout_kernel,
        out_shape=jax.ShapeDtypeStruct((BH, Sq, Dv), jnp.float32),
        in_specs=[smem, smem, vmem, vmem, vmem, vmem],
        out_specs=vmem,
    )(scale_arr, p_arr, q, k, v, u)

    return out.reshape(B, H, Sq, Dv)


if __name__ == "__main__":
    # Shapes consistent with the module's forward (the original torch constants
    # were mutually inconsistent; key's seq/head dims are fixed so the matmuls
    # chain): query (1,2,4,6), key (1,2,16,6), value (1,2,16,12).
    rng = jax.random.PRNGKey(0)
    kq, kk, kv = jax.random.split(rng, 3)
    query = jax.random.normal(kq, (1, 2, 4, 6), dtype=jnp.float32)
    key = jax.random.normal(kk, (1, 2, 16, 6), dtype=jnp.float32)
    value = jax.random.normal(kv, (1, 2, 16, 12), dtype=jnp.float32)

    inv_scale_factor = 0.2
    dropout_p = 0.5

    out = sdpa_dropout(query, key, value, inv_scale_factor, dropout_p, seed=0)
    jax.block_until_ready(out)
    assert out.shape == (1, 2, 4, 12)
    assert jnp.all(jnp.isfinite(out))

    # Sanity check: with p=0 the kernel must exactly reproduce plain SDPA.
    ref = jax.nn.softmax(
        jnp.einsum('bhqd,bhkd->bhqk', query, key) / inv_scale_factor, axis=-1)
    ref = jnp.einsum('bhqk,bhkd->bhqd', ref, value)
    got = sdpa_dropout(query, key, value, inv_scale_factor, 0.0, seed=0)
    assert jnp.allclose(got, ref, atol=1e-5, rtol=1e-5)

    print("KERNEL_OK")
</pallas_src>

<mosaic_0001>
module attributes {stable_mosaic.version = 11 : i64} {
  func.func @_sdpa_dropout_kernel(%arg0: memref<1xf32, #tpu.memory_space<smem>>, %arg1: memref<1xf32, #tpu.memory_space<smem>>, %arg2: memref<2x4x6xf32, #tpu.memory_space<vmem>>, %arg3: memref<2x16x6xf32, #tpu.memory_space<vmem>>, %arg4: memref<2x16x12xf32, #tpu.memory_space<vmem>>, %arg5: memref<2x4x16xf32, #tpu.memory_space<vmem>>, %arg6: memref<2x4x12xf32, #tpu.memory_space<vmem>>) attributes {dimension_semantics = [], scalar_prefetch = 0 : i64, scratch_operands = 0 : i64, tpu.core_type = #tpu.core_type<tc>} {
    %c0 = arith.constant 0 : index
    %0 = memref.load %arg0[%c0] : memref<1xf32, #tpu.memory_space<smem>>
    %cst = arith.constant 1.000000e+00 : f32
    %1 = arith.divf %cst, %0 : f32
    %c0_0 = arith.constant 0 : index
    %2 = memref.load %arg1[%c0_0] : memref<1xf32, #tpu.memory_space<smem>>
    %c0_1 = arith.constant 0 : index
    %c0_2 = arith.constant 0 : index
    %c0_3 = arith.constant 0 : index
    %3 = vector.load %arg2[%c0_1, %c0_2, %c0_3] : memref<2x4x6xf32, #tpu.memory_space<vmem>>, vector<2x4x6xf32>
    %4 = vector.broadcast %1 : f32 to vector<2x4x6xf32>
    %5 = arith.mulf %3, %4 : vector<2x4x6xf32>
    %c0_4 = arith.constant 0 : index
    %c0_5 = arith.constant 0 : index
    %c0_6 = arith.constant 0 : index
    %6 = vector.load %arg3[%c0_4, %c0_5, %c0_6] : memref<2x16x6xf32, #tpu.memory_space<vmem>>, vector<2x16x6xf32>
    %c0_7 = arith.constant 0 : index
    %c0_8 = arith.constant 0 : index
    %c0_9 = arith.constant 0 : index
    %7 = vector.load %arg4[%c0_7, %c0_8, %c0_9] : memref<2x16x12xf32, #tpu.memory_space<vmem>>, vector<2x16x12xf32>
    "tpu.trace_start"() <{level = 10 : i32, message = "bqd,bkd->bqk"}> : () -> ()
    %cst_10 = arith.constant dense<0.000000e+00> : vector<2x4x16xf32>
    %8 = tpu.matmul %5, %6, %cst_10 {dimension_numbers = #tpu.dot_dimension_numbers<[2], [2], [1], [1], [0, 0, 0, 1, 1, 1], [0], [0]>} : vector<2x4x6xf32>, vector<2x16x6xf32>, vector<2x4x16xf32> -> vector<2x4x16xf32>
    "tpu.trace_stop"() : () -> ()
    %cst_11 = arith.constant dense<0xFF800000> : vector<2x4xf32>
    %9 = vector.multi_reduction <maximumf>, %8, %cst_11 [2] : vector<2x4x16xf32> to vector<2x4xf32>
    %10 = vector.shape_cast %9 : vector<2x4xf32> to vector<2x4x1xf32>
    %11 = vector.broadcast %10 : vector<2x4x1xf32> to vector<2x4x16xf32>
    %12 = arith.subf %8, %11 : vector<2x4x16xf32>
    %13 = math.exp %12 : vector<2x4x16xf32>
    %cst_12 = arith.constant dense<0.000000e+00> : vector<2x4xf32>
    %14 = vector.multi_reduction <add>, %13, %cst_12 [2] : vector<2x4x16xf32> to vector<2x4xf32>
    %15 = vector.shape_cast %14 : vector<2x4xf32> to vector<2x4x1xf32>
    %cst_13 = arith.constant 1.000000e+00 : f32
    %16 = arith.cmpf olt, %2, %cst_13 : f32
    %cst_14 = arith.constant 1.000000e+00 : f32
    %17 = arith.subf %cst_14, %2 : f32
    %cst_15 = arith.constant 1.000000e+00 : f32
    %18 = arith.divf %cst_15, %17 : f32
    %cst_16 = arith.constant 0.000000e+00 : f32
    %19 = arith.select %16, %18, %cst_16 : f32
    %20 = vector.broadcast %19 : f32 to vector<2x4x1xf32>
    %21 = arith.divf %20, %15 : vector<2x4x1xf32>
    %c0_17 = arith.constant 0 : index
    %c0_18 = arith.constant 0 : index
    %c0_19 = arith.constant 0 : index
    %22 = vector.load %arg5[%c0_17, %c0_18, %c0_19] : memref<2x4x16xf32, #tpu.memory_space<vmem>>, vector<2x4x16xf32>
    %23 = vector.broadcast %2 : f32 to vector<2x4x16xf32>
    %24 = arith.cmpf oge, %22, %23 : vector<2x4x16xf32>
    %25 = vector.broadcast %21 : vector<2x4x1xf32> to vector<2x4x16xf32>
    %26 = arith.mulf %13, %25 : vector<2x4x16xf32>
    %cst_20 = arith.constant 0.000000e+00 : f32
    %27 = vector.broadcast %cst_20 : f32 to vector<2x4x16xf32>
    %28 = arith.select %24, %26, %27 : vector<2x4x16xi1>, vector<2x4x16xf32>
    "tpu.trace_start"() <{level = 10 : i32, message = "bqk,bkd->bqd"}> : () -> ()
    %cst_21 = arith.constant dense<0.000000e+00> : vector<2x4x12xf32>
    %29 = tpu.matmul %28, %7, %cst_21 {dimension_numbers = #tpu.dot_dimension_numbers<[2], [1], [1], [2], [0, 0, 0, 1, 1, 2], [0], [0]>} : vector<2x4x16xf32>, vector<2x16x12xf32>, vector<2x4x12xf32> -> vector<2x4x12xf32>
    "tpu.trace_stop"() : () -> ()
    %c0_22 = arith.constant 0 : index
    %c0_23 = arith.constant 0 : index
    %c0_24 = arith.constant 0 : index
    %30 = vector.load %arg6[%c0_22, %c0_23, %c0_24] : memref<2x4x12xf32, #tpu.memory_space<vmem>>, vector<2x4x12xf32>
    tpu.vector_store %arg6[%c0_22, %c0_23, %c0_24], %29 {strides = array<i32>} : memref<2x4x12xf32, #tpu.memory_space<vmem>>, vector<2x4x12xf32>,
    return
  }
}

</mosaic_0001>

<llo_original>
// kernel: tpu_custom_call.1
$region0: #{tpu_custom_call.1}
  #allocation0 [shape = 'u32[]', space=smem, size = 0x4, offset = 0x4, fixed_abs, tag = 'smem constant byte address 0x4 - core index']
  #allocation1 [shape = 'u32[144,128]{1,0:T(1,128)}', space=vmem, size = 0x12000, scoped, tag = 'internal scratch']
  #allocation2 [shape = 'f32[1]{0:T(128)S(6)}', space=smem, size = 0x200, scoped, tag = 'scoped memory for tpu_custom_call.1']
  #allocation3 [shape = 'f32[1]{0:T(128)S(6)}', space=smem, size = 0x200, scoped, tag = 'scoped memory for tpu_custom_call.1']
  %s0 = inlined_call_operand.<no memory space> [shape: f32[1], index: 0, kind: input, shape index: {}]
  %s1 = inlined_call_operand.<no memory space> [shape: f32[1], index: 1, kind: input, shape index: {}]
  %s2 = inlined_call_operand.vmem [shape: f32[2,4,6], index: 2, kind: input, shape index: {}]
  %s3 = inlined_call_operand.vmem [shape: f32[2,16,6], index: 3, kind: input, shape index: {}]
  %s4 = inlined_call_operand.vmem [shape: f32[2,16,12], index: 4, kind: input, shape index: {}]
  %s5 = inlined_call_operand.vmem [shape: f32[2,4,16], index: 5, kind: input, shape index: {}]
  %s6 = inlined_call_operand.hbm [shape: f32[2,4,12], index: 6, kind: output, shape index: {}]
  %s7 = sld [smem:[#allocation0]]
  $region34: #{tpu_custom_call.1} parent=0
    _
  %s9 = ssub.s32 1, %s7
  %s10 = scalar_select 0, %s9, %s7
  %11 = sst [smem:[#allocation2]] %s0
  %12 = sst [smem:[#allocation3]] %s1
  $region1: #{tpu_custom_call.1} parent=0
    #allocation4 [shape = 'u8[4096]{0}', space=vmem, size = 0x1000, scoped, tag = 'output window, operand 0, single buffered']
    #allocation5 [shape = 's32[1]{0}', space=sflag, size = 0x4, scoped, tag = 'scoped memory for tpu_custom_call.1']
    %13 = vsyncpa [#allocation5], 0
    // Predicated region
    $region2: #{tpu_custom_call.1} parent=1 // pred_check
      _
    $region3: #{tpu_custom_call.1} parent=1 // pred_check_branch
      %15 = sbr.rel (0) target = $region5
    $region4: #{tpu_custom_call.1} parent=1 // pred_region
      _
    $region5: #{tpu_custom_call.1} parent=1 // pred_fallthru
      _
    // Predicated region
    $region6: #{tpu_custom_call.1} parent=1 // pred_check
      _
    $region7: #{tpu_custom_call.1} parent=1 // pred_check_branch
      %17 = sbr.rel (0) target = $region9
    $region8: #{tpu_custom_call.1} parent=1 // pred_region
      _
    $region9: #{tpu_custom_call.1} parent=1 // pred_fallthru
      _
    // Predicated region
    $region10: #{tpu_custom_call.1} parent=1 // pred_check
      _
    $region11: #{tpu_custom_call.1} parent=1 // pred_check_branch
      %19 = sbr.rel (0) target = $region13
    $region12: #{tpu_custom_call.1} parent=1 // pred_region
      _
    $region13: #{tpu_custom_call.1} parent=1 // pred_fallthru
      _
    // Predicated region
    $region14: #{tpu_custom_call.1} parent=1 // pred_check
      _
    $region15: #{tpu_custom_call.1} parent=1 // pred_check_branch
      %21 = sbr.rel (0) target = $region17
    $region16: #{tpu_custom_call.1} parent=1 // pred_region
      _
    $region17: #{tpu_custom_call.1} parent=1 // pred_fallthru
      _
    // Predicated region
    $region18: #{tpu_custom_call.1} parent=1 // pred_check
      _
    $region19: #{tpu_custom_call.1} parent=1 // pred_check_branch
      %23 = sbr.rel (0) target = $region21
    $region20: #{tpu_custom_call.1} parent=1 // pred_region
      _
    $region21: #{tpu_custom_call.1} parent=1 // pred_fallthru
      _
    // Predicated region
    $region22: #{tpu_custom_call.1} parent=1 // pred_check
      _
    $region23: #{tpu_custom_call.1} parent=1 // pred_check_branch
      %25 = sbr.rel (0) target = $region25
    $region24: #{tpu_custom_call.1} parent=1 // pred_region
      _
    $region25: #{tpu_custom_call.1} parent=1 // pred_fallthru
      _
    %s26 = sld [smem:[#allocation2]]
    %v27 = vstv %s26
    %v28 = vrcp.pop %v27
    %s29 = vtos %v28
    %s30 = sld [smem:[#allocation3]]
    %v31 = vld [vmem:[%s2] sm:$0xf]
    %v32 = vld [vmem:[%s2 + $0x4] sm:$0xf]
    %v33 = vstv %s29
    %v34 = vmul.f32 %v31, %v33
    %v35 = vmul.f32 %v32, %v33
    %v36 = vld [vmem:[%s3] sm:$0xff]
    %v37 = vld [vmem:[%s3 + $0x8] sm:$0xff]
    %v38 = vld [vmem:[%s3 + $0x10] sm:$0xff]
    %v39 = vld [vmem:[%s3 + $0x18] sm:$0xff]
    %v40 = vld [vmem:[%s4] sm:$0xff]
    %v41 = vld [vmem:[%s4 + $0x8] sm:$0xff]
    %v42 = vld [vmem:[%s4 + $0x10] sm:$0xff]
    %v43 = vld [vmem:[%s4 + $0x18] sm:$0xff]
    %vm44 = vcmask 48128
    %v46 = vsel %vm44, %v34, 0
    %v49 = vsel %vm44, %v36, 0
    %v52 = vsel %vm44, %v37, 0
    %54 = vmatprep.subr.mxu0 0.0
    %55 = vmatpush1.xpose.msra.mxu0 %v49
    %56 = vmatprep.subr.mxu0 0.0
    %57 = vmatpush1.xpose.msra.mxu0 %v52
    %58 = vmatprep.subr.mxu0 0.0
    %59 = vmatpush1.xpose.msra.mxu0 0.0
    %60 = vmatprep.subr.mxu0 0.0
    %61 = vmatpush1.xpose.msra.mxu0 0.0
    %62 = vmatprep.subr.mxu0 0.0
    %63 = vmatpush1.xpose.msra.mxu0 0.0
    %64 = vmatprep.subr.mxu0 0.0
    %65 = vmatpush1.xpose.msra.mxu0 0.0
    %66 = vmatprep.subr.mxu0 0.0
    %67 = vmatpush1.xpose.msra.mxu0 0.0
    %68 = vmatprep.subr.mxu0 0.0
    %69 = vmatpush1.xpose.msra.mxu0 0.0
    %70 = vmatprep.subr.mxu0 0.0
    %71 = vmatpush1.xpose.msra.mxu0 0.0
    %72 = vmatprep.subr.mxu0 0.0
    %73 = vmatpush1.xpose.msra.mxu0 0.0
    %74 = vmatprep.subr.mxu0 0.0
    %75 = vmatpush1.xpose.msra.mxu0 0.0
    %76 = vmatprep.subr.mxu0 0.0
    %77 = vmatpush1.xpose.msra.mxu0 0.0
    %78 = vmatprep.subr.mxu0 0.0
    %79 = vmatpush1.xpose.msra.mxu0 0.0
    %80 = vmatprep.subr.mxu0 0.0
    %81 = vmatpush1.xpose.msra.mxu0 0.0
    %82 = vmatprep.subr.mxu0 0.0
    %83 = vmatpush1.xpose.msra.mxu0 0.0
    %84 = vmatprep.subr.mxu0 0.0
    %85 = vmatpush1.xpose.msra.mxu0 0.0
    %86 = vmatprep.subr.mxu0 0.0
    %87 = vmatpush1.xpose.msra.mxu0 0.0
    %88 = vmatprep.subr.mxu0 0.0
    %89 = vmatpush1.xpose.msra.mxu0 0.0
    %90 = vmatprep.subr.mxu0 0.0
    %91 = vmatpush1.xpose.msra.mxu0 0.0
    %92 = vmatprep.subr.mxu0 0.0
    %93 = vmatpush1.xpose.msra.mxu0 0.0
    %94 = vmatprep.subr.mxu0 0.0
    %95 = vmatpush1.xpose.msra.mxu0 0.0
    %96 = vmatprep.subr.mxu0 0.0
    %97 = vmatpush1.xpose.msra.mxu0 0.0
    %98 = vmatprep.subr.mxu0 0.0
    %99 = vmatpush1.xpose.msra.mxu0 0.0
    %100 = vmatprep.subr.mxu0 0.0
    %101 = vmatpush1.xpose.msra.mxu0 0.0
    %102 = vmatprep.subr.mxu0 0.0
    %103 = vmatpush1.xpose.msra.mxu0 0.0
    %104 = vmatprep.subr.mxu0 0.0
    %105 = vmatpush1.xpose.msra.mxu0 0.0
    %106 = vmatprep.subr.mxu0 0.0
    %107 = vmatpush1.xpose.msra.mxu0 0.0
    %108 = vmatprep.subr.mxu0 0.0
    %109 = vmatpush1.xpose.msra.mxu0 0.0
    %110 = vmatprep.subr.mxu0 0.0
    %111 = vmatpush1.xpose.msra.mxu0 0.0
    %112 = vmatprep.subr.mxu0 0.0
    %113 = vmatpush1.xpose.msra.mxu0 0.0
    %114 = vmatprep.subr.mxu0 0.0
    %115 = vmatpush1.xpose.msra.mxu0 0.0
    %116 = vmatprep.subr.mxu0 0.0
    %117 = vmatpush1.xpose.msra.mxu0 0.0
    %118 = vmatprep.mubr.f32.mxu0 0.0
    %119 = vmatmul.mubr.f32.gmra.mrb[0].mxu0 %v46
    %v120 = vpop.f32.mrb[0].mxu0
    %v121 = vadd.f32 0.0, %v120
    %v122 = vpop.f32.mrb[0].mxu0
    %123 = vdwg.mxu0
    %v125 = vsel %vm44, %v35, 0
    %v128 = vsel %vm44, %v38, 0
    %v131 = vsel %vm44, %v39, 0
    %133 = vmatprep.subr.mxu0 0.0
    %134 = vmatpush1.xpose.msra.mxu0 %v128
    %135 = vmatprep.subr.mxu0 0.0
    %136 = vmatpush1.xpose.msra.mxu0 %v131
    %137 = vmatprep.subr.mxu0 0.0
    %138 = vmatpush1.xpose.msra.mxu0 0.0
    %139 = vmatprep.subr.mxu0 0.0
    %140 = vmatpush1.xpose.msra.mxu0 0.0
    %141 = vmatprep.subr.mxu0 0.0
    %142 = vmatpush1.xpose.msra.mxu0 0.0
    %143 = vmatprep.subr.mxu0 0.0
    %144 = vmatpush1.xpose.msra.mxu0 0.0
    %145 = vmatprep.subr.mxu0 0.0
    %146 = vmatpush1.xpose.msra.mxu0 0.0
    %147 = vmatprep.subr.mxu0 0.0
    %148 = vmatpush1.xpose.msra.mxu0 0.0
    %149 = vmatprep.subr.mxu0 0.0
    %150 = vmatpush1.xpose.msra.mxu0 0.0
    %151 = vmatprep.subr.mxu0 0.0
    %152 = vmatpush1.xpose.msra.mxu0 0.0
    %153 = vmatprep.subr.mxu0 0.0
    %154 = vmatpush1.xpose.msra.mxu0 0.0
    %155 = vmatprep.subr.mxu0 0.0
    %156 = vmatpush1.xpose.msra.mxu0 0.0
    %157 = vmatprep.subr.mxu0 0.0
    %158 = vmatpush1.xpose.msra.mxu0 0.0
    %159 = vmatprep.subr.mxu0 0.0
    %160 = vmatpush1.xpose.msra.mxu0 0.0
    %161 = vmatprep.subr.mxu0 0.0
    %162 = vmatpush1.xpose.msra.mxu0 0.0
    %163 = vmatprep.subr.mxu0 0.0
    %164 = vmatpush1.xpose.msra.mxu0 0.0
    %165 = vmatprep.subr.mxu0 0.0
    %166 = vmatpush1.xpose.msra.mxu0 0.0
    %167 = vmatprep.subr.mxu0 0.0
    %168 = vmatpush1.xpose.msra.mxu0 0.0
    %169 = vmatprep.subr.mxu0 0.0
    %170 = vmatpush1.xpose.msra.mxu0 0.0
    %171 = vmatprep.subr.mxu0 0.0
    %172 = vmatpush1.xpose.msra.mxu0 0.0
    %173 = vmatprep.subr.mxu0 0.0
    %174 = vmatpush1.xpose.msra.mxu0 0.0
    %175 = vmatprep.subr.mxu0 0.0
    %176 = vmatpush1.xpose.msra.mxu0 0.0
    %177 = vmatprep.subr.mxu0 0.0
    %178 = vmatpush1.xpose.msra.mxu0 0.0
    %179 = vmatprep.subr.mxu0 0.0
    %180 = vmatpush1.xpose.msra.mxu0 0.0
    %181 = vmatprep.subr.mxu0 0.0
    %182 = vmatpush1.xpose.msra.mxu0 0.0
    %183 = vmatprep.subr.mxu0 0.0
    %184 = vmatpush1.xpose.msra.mxu0 0.0
    %185 = vmatprep.subr.mxu0 0.0
    %186 = vmatpush1.xpose.msra.mxu0 0.0
    %187 = vmatprep.subr.mxu0 0.0
    %188 = vmatpush1.xpose.msra.mxu0 0.0
    %189 = vmatprep.subr.mxu0 0.0
    %190 = vmatpush1.xpose.msra.mxu0 0.0
    %191 = vmatprep.subr.mxu0 0.0
    %192 = vmatpush1.xpose.msra.mxu0 0.0
    %193 = vmatprep.subr.mxu0 0.0
    %194 = vmatpush1.xpose.msra.mxu0 0.0
    %195 = vmatprep.subr.mxu0 0.0
    %196 = vmatpush1.xpose.msra.mxu0 0.0
    %197 = vmatprep.mubr.f32.mxu0 0.0
    %198 = vmatmul.mubr.f32.gmra.mrb[0].mxu0 %v125
    %v199 = vpop.f32.mrb[0].mxu0
    %v200 = vadd.f32 0.0, %v199
    %v201 = vpop.f32.mrb[0].mxu0
    %202 = vdwg.mxu0
    %vm203 = vcmask 125952
    %v204 = vsel %vm203, %v121, -inf
    %205 = vmax.xlane.f32.xlu0 %v204
    %v206 = vpop.xlane.xlu0 %205
    %v207 = vsel %vm203, %v200, -inf
    %208 = vmax.xlane.f32.xlu0 %v207
    %v209 = vpop.xlane.xlu0 %208
    %v210 = vsub.f32 %v121, %v206
    %v211 = vsub.f32 %v200, %v209
    %v212 = vmul.f32 %v210, 1.442695
    %v213 = vpow.pop %v212
    %v214 = vmul.f32 %v211, 1.442695
    %v215 = vpow.pop %v214
    %v216 = vsel %vm203, %v213, 0.0
    %217 = vadd.xlane.f32.xlu0 %v216
    %v218 = vpop.xlane.xlu0 %217
    %v219 = vsel %vm203, %v215, 0.0
    %220 = vadd.xlane.f32.xlu0 %v219
    %v221 = vpop.xlane.xlu0 %220
    %p222 = scmp.lt.f32.partialorder %s30, 1.0
    %s223 = ssub.f32 1.0, %s30
    %v224 = vstv %s223
    %v225 = vrcp.pop %v224
    %s226 = vtos %v225
    %s227 = scalar_select %p222, %s226, 0.0
    %v228 = vstv %s227
    %v229 = vrcp.pop %v218
    %v230 = vmul.f32 %v228, %v229
    %v231 = vrcp.pop %v221
    %v232 = vmul.f32 %v228, %v231
    %v233 = vld [vmem:[%s5] sm:$0xf]
    %v234 = vld [vmem:[%s5 + $0x4] sm:$0xf]
    %v235 = vstv %s30
    %vm236 = vcmp.ge.f32.partialorder %v233, %v235
    %vm237 = vcmp.ge.f32.partialorder %v234, %v235
    %v238 = vmul.f32 %v213, %v230
    %v239 = vmul.f32 %v215, %v232
    %v240 = vsel %vm236, %v238, 0.0
    %v241 = vsel %vm237, %v239, 0.0
    %vm242 = vcmask 130048
    %v244 = vsel %vm242, %v240, 0
    %246 = vmatprep.subr.mxu0 0.0
    %247 = vmatpush1.msra.mxu0 %v40
    %248 = vmatprep.subr.mxu0 0.0
    %249 = vmatpush1.msra.mxu0 %v41
    %250 = vmatprep.subr.mxu0 0.0
    %251 = vmatpush1.msra.mxu0 0.0
    %252 = vmatprep.subr.mxu0 0.0
    %253 = vmatpush1.msra.mxu0 0.0
    %254 = vmatprep.subr.mxu0 0.0
    %255 = vmatpush1.msra.mxu0 0.0
    %256 = vmatprep.subr.mxu0 0.0
    %257 = vmatpush1.msra.mxu0 0.0
    %258 = vmatprep.subr.mxu0 0.0
    %259 = vmatpush1.msra.mxu0 0.0
    %260 = vmatprep.subr.mxu0 0.0
    %261 = vmatpush1.msra.mxu0 0.0
    %262 = vmatprep.subr.mxu0 0.0
    %263 = vmatpush1.msra.mxu0 0.0
    %264 = vmatprep.subr.mxu0 0.0
    %265 = vmatpush1.msra.mxu0 0.0
    %266 = vmatprep.subr.mxu0 0.0
    %267 = vmatpush1.msra.mxu0 0.0
    %268 = vmatprep.subr.mxu0 0.0
    %269 = vmatpush1.msra.mxu0 0.0
    %270 = vmatprep.subr.mxu0 0.0
    %271 = vmatpush1.msra.mxu0 0.0
    %272 = vmatprep.subr.mxu0 0.0
    %273 = vmatpush1.msra.mxu0 0.0
    %274 = vmatprep.subr.mxu0 0.0
    %275 = vmatpush1.msra.mxu0 0.0
    %276 = vmatprep.subr.mxu0 0.0
    %277 = vmatpush1.msra.mxu0 0.0
    %278 = vmatprep.subr.mxu0 0.0
    %279 = vmatpush1.msra.mxu0 0.0
    %280 = vmatprep.subr.mxu0 0.0
    %281 = vmatpush1.msra.mxu0 0.0
    %282 = vmatprep.subr.mxu0 0.0
    %283 = vmatpush1.msra.mxu0 0.0
    %284 = vmatprep.subr.mxu0 0.0
    %285 = vmatpush1.msra.mxu0 0.0
    %286 = vmatprep.subr.mxu0 0.0
    %287 = vmatpush1.msra.mxu0 0.0
    %288 = vmatprep.subr.mxu0 0.0
    %289 = vmatpush1.msra.mxu0 0.0
    %290 = vmatprep.subr.mxu0 0.0
    %291 = vmatpush1.msra.mxu0 0.0
    %292 = vmatprep.subr.mxu0 0.0
    %293 = vmatpush1.msra.mxu0 0.0
    %294 = vmatprep.subr.mxu0 0.0
    %295 = vmatpush1.msra.mxu0 0.0
    %296 = vmatprep.subr.mxu0 0.0
    %297 = vmatpush1.msra.mxu0 0.0
    %298 = vmatprep.subr.mxu0 0.0
    %299 = vmatpush1.msra.mxu0 0.0
    %300 = vmatprep.subr.mxu0 0.0
    %301 = vmatpush1.msra.mxu0 0.0
    %302 = vmatprep.subr.mxu0 0.0
    %303 = vmatpush1.msra.mxu0 0.0
    %304 = vmatprep.subr.mxu0 0.0
    %305 = vmatpush1.msra.mxu0 0.0
    %306 = vmatprep.subr.mxu0 0.0
    %307 = vmatpush1.msra.mxu0 0.0
    %308 = vmatprep.subr.mxu0 0.0
    %309 = vmatpush1.msra.mxu0 0.0
    %310 = vmatprep.mubr.f32.mxu0 0.0
    %311 = vmatmul.mubr.f32.gmra.mrb[0].mxu0 %v244
    %v312 = vpop.f32.mrb[0].mxu0
    %v313 = vadd.f32 0.0, %v312
    %v314 = vpop.f32.mrb[0].mxu0
    %315 = vdwg.mxu0
    %v317 = vsel %vm242, %v241, 0
    %319 = vmatprep.subr.mxu0 0.0
    %320 = vmatpush1.msra.mxu0 %v42
    %321 = vmatprep.subr.mxu0 0.0
    %322 = vmatpush1.msra.mxu0 %v43
    %323 = vmatprep.subr.mxu0 0.0
    %324 = vmatpush1.msra.mxu0 0.0
    %325 = vmatprep.subr.mxu0 0.0
    %326 = vmatpush1.msra.mxu0 0.0
    %327 = vmatprep.subr.mxu0 0.0
    %328 = vmatpush1.msra.mxu0 0.0
    %329 = vmatprep.subr.mxu0 0.0
    %330 = vmatpush1.msra.mxu0 0.0
    %331 = vmatprep.subr.mxu0 0.0
    %332 = vmatpush1.msra.mxu0 0.0
    %333 = vmatprep.subr.mxu0 0.0
    %334 = vmatpush1.msra.mxu0 0.0
    %335 = vmatprep.subr.mxu0 0.0
    %336 = vmatpush1.msra.mxu0 0.0
    %337 = vmatprep.subr.mxu0 0.0
    %338 = vmatpush1.msra.mxu0 0.0
    %339 = vmatprep.subr.mxu0 0.0
    %340 = vmatpush1.msra.mxu0 0.0
    %341 = vmatprep.subr.mxu0 0.0
    %342 = vmatpush1.msra.mxu0 0.0
    %343 = vmatprep.subr.mxu0 0.0
    %344 = vmatpush1.msra.mxu0 0.0
    %345 = vmatprep.subr.mxu0 0.0
    %346 = vmatpush1.msra.mxu0 0.0
    %347 = vmatprep.subr.mxu0 0.0
    %348 = vmatpush1.msra.mxu0 0.0
    %349 = vmatprep.subr.mxu0 0.0
    %350 = vmatpush1.msra.mxu0 0.0
    %351 = vmatprep.subr.mxu0 0.0
    %352 = vmatpush1.msra.mxu0 0.0
    %353 = vmatprep.subr.mxu0 0.0
    %354 = vmatpush1.msra.mxu0 0.0
    %355 = vmatprep.subr.mxu0 0.0
    %356 = vmatpush1.msra.mxu0 0.0
    %357 = vmatprep.subr.mxu0 0.0
    %358 = vmatpush1.msra.mxu0 0.0
    %359 = vmatprep.subr.mxu0 0.0
    %360 = vmatpush1.msra.mxu0 0.0
    %361 = vmatprep.subr.mxu0 0.0
    %362 = vmatpush1.msra.mxu0 0.0
    %363 = vmatprep.subr.mxu0 0.0
    %364 = vmatpush1.msra.mxu0 0.0
    %365 = vmatprep.subr.mxu0 0.0
    %366 = vmatpush1.msra.mxu0 0.0
    %367 = vmatprep.subr.mxu0 0.0
    %368 = vmatpush1.msra.mxu0 0.0
    %369 = vmatprep.subr.mxu0 0.0
    %370 = vmatpush1.msra.mxu0 0.0
    %371 = vmatprep.subr.mxu0 0.0
    %372 = vmatpush1.msra.mxu0 0.0
    %373 = vmatprep.subr.mxu0 0.0
    %374 = vmatpush1.msra.mxu0 0.0
    %375 = vmatprep.subr.mxu0 0.0
    %376 = vmatpush1.msra.mxu0 0.0
    %377 = vmatprep.subr.mxu0 0.0
    %378 = vmatpush1.msra.mxu0 0.0
    %379 = vmatprep.subr.mxu0 0.0
    %380 = vmatpush1.msra.mxu0 0.0
    %381 = vmatprep.subr.mxu0 0.0
    %382 = vmatpush1.msra.mxu0 0.0
    %383 = vmatprep.mubr.f32.mxu0 0.0
    %384 = vmatmul.mubr.f32.gmra.mrb[0].mxu0 %v317
    %v385 = vpop.f32.mrb[0].mxu0
    %v386 = vadd.f32 0.0, %v385
    %v387 = vpop.f32.mrb[0].mxu0
    %388 = vdwg.mxu0
    %vm389 = vcmask 93184
    %390 = vst.msk [vmem:[#allocation4] sm:$0xf] %vm389, %v313
    %391 = vst.msk [vmem:[#allocation4 + $0x4] sm:$0xf] %vm389, %v386
    // Predicated region
    $region26: #{tpu_custom_call.1} parent=1 // pred_check
      _
    $region27: #{tpu_custom_call.1} parent=1 // pred_check_branch
      %393 = sbr.rel (0) target = $region29
    $region28: #{tpu_custom_call.1} parent=1 // pred_region
      %s395 = ssub.s32 128, 128
      %396 = vsyncadd [#allocation5], %s395
      %s397 = sshll.u32 [#allocation4], 4
      %s398 = int_to_ptr.vmem [resolvable:$true] %s397
      %403 = dma.vmem_to_hbm [thread:$0]  %s398, 128, %s6, [#allocation5], 64, 64, 4
    $region29: #{tpu_custom_call.1} parent=1 // pred_fallthru
      _
    // Predicated region
    $region30: #{tpu_custom_call.1} parent=1 // pred_check
      _
    $region31: #{tpu_custom_call.1} parent=1 // pred_check_branch
      %405 = sbr.rel (0) target = $region33
    $region32: #{tpu_custom_call.1} parent=1 // pred_region
      %406 = dma.done [#allocation5], 128
    $region33: #{tpu_custom_call.1} parent=1 // pred_fallthru
      _
    %407 = vsyncpa [#allocation5], 1

</llo_original>
